<compile_context>
chip_gen: v7x
topology: tpu7x:2x2x1
jax: 0.10.0
libtpu: 0.0.40
codegen_flags: <defaults>
</compile_context>

<pallas_src>
import functools

import jax
import jax.numpy as jnp
from jax import lax
from jax.experimental import pallas as pl
from jax.experimental.pallas import tpu as pltpu


def _round_up(n: int, m: int) -> int:
    return ((n + m - 1) // m) * m


def _vmem_limit_bytes() -> int:
    try:
        cap = int(pltpu.get_tpu_info().vmem_capacity_bytes)
    except Exception:
        cap = 64 * 1024 * 1024  # conservative fallback (v7x per-TC VMEM)
    # leave headroom for compiler-internal scratch
    return max(32 * 1024 * 1024, min(int(0.75 * cap), 96 * 1024 * 1024))


def _select_tiles(B, K, D, sx, sd, so, block_b, block_k, budget):
    """Pick (bb, bk, tk, Dp, b_outer) minimizing modeled HBM traffic."""
    # ---- feature-dim tile (reduction axis) ----
    TK_MAX = 1024
    if D <= TK_MAX:
        tk, Dp = D, D                       # single reduction step, no D pad
    else:
        tk, Dp = 128, _round_up(D, 128)
        for cand in range(256, TK_MAX + 1, 128):
            dp = _round_up(D, cand)
            if dp < Dp or (dp == Dp and cand > tk):
                tk, Dp = cand, dp
    nd = Dp // tk

    bb_cands = [c for c in (512, 384, 256, 128, 64, 32, 16, 8) if c <= max(block_b, 8)]
    bk_cands = [c for c in (512, 384, 256, 128) if c <= max(block_k, 128)]

    def vmem_est(bb, bk):
        return (2 * (bb * tk * sx + bk * tk * sd)   # double-buffered operands
                + 2 * bk * 4                        # bias tile (f32)
                + 2 * bb * bk * so                  # output tile
                + bb * bk * 4)                      # f32 accumulator scratch

    def traffic(bb, bk):
        Bp, Kp = _round_up(B, bb), _round_up(K, bk)
        nb, nk = Bp // bb, Kp // bk
        x_bytes, d_bytes = Bp * Dp * sx, Kp * Dp * sd
        if nd == 1:
            # one operand can stay VMEM-resident across the inner grid axis
            return min(x_bytes + nb * d_bytes, nk * x_bytes + d_bytes)
        return nk * x_bytes + nb * d_bytes

    best = None
    for bb in bb_cands:
        for bk in bk_cands:
            if vmem_est(bb, bk) > budget:
                continue
            key = (traffic(bb, bk), -(bb * bk))
            if best is None or key < best[0]:
                best = (key, bb, bk)
    if best is None:
        bb, bk = 8, 128                     # minimal-footprint fallback
    else:
        _, bb, bk = best

    Bp, Kp = _round_up(B, bb), _round_up(K, bk)
    nb, nk = Bp // bb, Kp // bk
    if nd == 1:
        b_outer = (Bp * Dp * sx + nb * Kp * Dp * sd) <= (nk * Bp * Dp * sx + Kp * Dp * sd)
    else:
        b_outer = True                      # symmetric traffic when D is tiled
    return bb, bk, tk, Dp, b_outer


def _eucl_mlr_kernel(x_ref, dirs_ref, bias_ref, out_ref, acc_ref, *, signed: bool):
    # x_ref:    (bb, tk)  batch x feature tile (native dtype, no up-cast)
    # dirs_ref: (bk, tk)  hyperplane-direction tile (native dtype)
    # bias_ref: (1, bk)   precomputed <points_k, dirs_k> in f32 (hoisted)
    # out_ref:  (bb, bk)  logits tile
    # acc_ref:  (bb, bk)  f32 accumulator scratch (lives across the d axis)
    d = pl.program_id(2)

    @pl.when(d == 0)
    def _():
        acc_ref[...] = jnp.zeros_like(acc_ref)

    # MXU matmul, contracting the feature dim of both operands directly
    # (no materialized transpose of dirs), f32 accumulation.
    acc_ref[...] += lax.dot_general(
        x_ref[...], dirs_ref[...],
        dimension_numbers=(((1,), (1,)), ((), ())),
        preferred_element_type=jnp.float32,
    )

    @pl.when(d == pl.num_programs(2) - 1)
    def _():
        # NOTE: x·dir − <p, dir> instead of (x − p)·dir; f32 accumulation keeps
        # this within tolerance of the PyTorch forward.
        logits = acc_ref[...] - bias_ref[...]       # broadcast (1, bk) over rows
        if not signed:
            logits = jnp.abs(logits)
        out_ref[...] = logits.astype(out_ref.dtype)


def eucl_mlr(x, points, dirs, *, signed: bool = True,
             block_b: int = 512, block_k: int = 512, compute_dtype=None):
    """x: (B, D); points/dirs: (K, D). Returns (B, K) logits (dtype of x)."""
    B, D = x.shape
    K, D2 = points.shape
    assert D == D2 and dirs.shape == (K, D)

    out_dtype = x.dtype
    if compute_dtype is not None:
        # optional bf16 matmul path (tolerance permitting); accumulation stays f32
        x = x.astype(compute_dtype)
        dirs = dirs.astype(compute_dtype)

    # Hoisted bias: computed once (in f32) outside the grid loop.
    # TODO(synk): in a real module, cache the padded params + bias across calls
    # instead of re-padding / re-reducing the (K, D) weights every forward.
    bias = jnp.sum(points.astype(jnp.float32) * dirs.astype(jnp.float32),
                   axis=-1)[None, :]                 # (1, K) f32

    sx = jnp.dtype(x.dtype).itemsize
    sd = jnp.dtype(dirs.dtype).itemsize
    so = jnp.dtype(out_dtype).itemsize

    vmem_limit = _vmem_limit_bytes()
    blocks_budget = int(0.7 * vmem_limit)

    bb, bk, tk, Dp, b_outer = _select_tiles(
        B, K, D, sx, sd, so, block_b, block_k, blocks_budget)
    Bp, Kp = _round_up(B, bb), _round_up(K, bk)
    nb, nk, nd = Bp // bb, Kp // bk, Dp // tk

    x_p = x if (Bp == B and Dp == D) else jnp.pad(x, ((0, Bp - B), (0, Dp - D)))
    dirs_p = dirs if (Kp == K and Dp == D) else jnp.pad(dirs, ((0, Kp - K), (0, Dp - D)))
    bias_p = bias if Kp == K else jnp.pad(bias, ((0, 0), (0, Kp - K)))

    kernel = functools.partial(_eucl_mlr_kernel, signed=signed)

    if b_outer:
        grid = (nb, nk, nd)
        x_map = lambda i, j, d: (i, d)
        dirs_map = lambda i, j, d: (j, d)
        bias_map = lambda i, j, d: (0, j)
        out_map = lambda i, j, d: (i, j)
    else:
        grid = (nk, nb, nd)
        x_map = lambda j, i, d: (i, d)
        dirs_map = lambda j, i, d: (j, d)
        bias_map = lambda j, i, d: (0, j)
        out_map = lambda j, i, d: (i, j)

    out = pl.pallas_call(
        kernel,
        out_shape=jax.ShapeDtypeStruct((Bp, Kp), out_dtype),
        grid_spec=pltpu.PrefetchScalarGridSpec(
            num_scalar_prefetch=0,
            grid=grid,
            in_specs=[
                pl.BlockSpec((bb, tk), x_map),      # x batch/feature tile
                pl.BlockSpec((bk, tk), dirs_map),   # dirs K/feature tile
                pl.BlockSpec((1, bk), bias_map),    # bias K tile
            ],
            out_specs=pl.BlockSpec((bb, bk), out_map),
            scratch_shapes=[pltpu.VMEM((bb, bk), jnp.float32)],
        ),
        compiler_params=pltpu.CompilerParams(
            dimension_semantics=("parallel", "parallel", "arbitrary"),
            vmem_limit_bytes=vmem_limit,
        ),
    )(x_p, dirs_p, bias_p)

    return out[:B, :K]


def eucl_mlr_reference(x, points, dirs, *, signed: bool = True):
    # pure-JAX reference mirroring the PyTorch forward:
    #   ((x.unsqueeze(-2) - points) * dirs).sum(-1), abs() if not signed
    diff = x[:, None, :] - points[None, :, :]
    out = jnp.sum(diff * dirs[None, :, :], axis=-1)
    if not signed:
        out = jnp.abs(out)
    return out.astype(x.dtype)


if __name__ == "__main__":
    key = jax.random.PRNGKey(0)

    # --- small test (module-default-ish shapes): D=32, K=16, B=8 ---
    plane_shape, num_planes, batch = 32, 16, 8
    kx, kp, kd = jax.random.split(key, 3)
    x = jax.random.normal(kx, (batch, plane_shape), dtype=jnp.float32)
    points = 0.05 * jax.random.normal(kp, (num_planes, plane_shape), dtype=jnp.float32)
    dirs = jax.random.normal(kd, (num_planes, plane_shape), dtype=jnp.float32)

    out = jax.block_until_ready(eucl_mlr(x, points, dirs, signed=True))
    ref = eucl_mlr_reference(x, points, dirs, signed=True)
    assert out.shape == (batch, num_planes)
    assert jnp.allclose(out, ref, atol=1e-4, rtol=1e-4)

    out_u = jax.block_until_ready(eucl_mlr(x, points, dirs, signed=False))
    ref_u = eucl_mlr_reference(x, points, dirs, signed=False)
    assert jnp.allclose(out_u, ref_u, atol=1e-4, rtol=1e-4)

    # --- larger test exercising the D-reduction axis + ragged K/B padding ---
    D2, K2, B2 = 2304, 640, 48
    kx2, kp2, kd2 = jax.random.split(jax.random.PRNGKey(1), 3)
    x2 = jax.random.normal(kx2, (B2, D2), dtype=jnp.float32)
    points2 = 0.05 * jax.random.normal(kp2, (K2, D2), dtype=jnp.float32)
    dirs2 = jax.random.normal(kd2, (K2, D2), dtype=jnp.float32)

    out2 = jax.block_until_ready(eucl_mlr(x2, points2, dirs2, signed=False))
    ref2 = eucl_mlr_reference(x2, points2, dirs2, signed=False)
    assert out2.shape == (B2, K2)
    assert jnp.allclose(out2, ref2, atol=1e-3, rtol=1e-3)

    print("KERNEL_OK")
</pallas_src>

<mosaic_0001>
module attributes {stable_mosaic.version = 11 : i64} {
  func.func @_eucl_mlr_kernel(%arg0: i32, %arg1: i32, %arg2: i32, %arg3: memref<8x32xf32, #tpu.memory_space<vmem>>, %arg4: memref<128x32xf32, #tpu.memory_space<vmem>>, %arg5: memref<1x128xf32, #tpu.memory_space<vmem>>, %arg6: memref<8x128xf32, #tpu.memory_space<vmem>>, %arg7: memref<8x128xf32, #tpu.memory_space<vmem>>) attributes {dimension_semantics = [#tpu.dimension_semantics<parallel>, #tpu.dimension_semantics<parallel>, #tpu.dimension_semantics<arbitrary>], iteration_bounds = array<i64: 1, 1, 1>, scalar_prefetch = 0 : i64, scratch_operands = 1 : i64, tpu.core_type = #tpu.core_type<tc>, window_params = [{transform_indices = @transform_0, window_bounds = array<i64: 8, 32>}, {transform_indices = @transform_1, window_bounds = array<i64: 128, 32>}, {transform_indices = @transform_2, window_bounds = array<i64: 1, 128>}, {transform_indices = @transform_3, window_bounds = array<i64: 8, 128>}]} {
    %c0_i32 = arith.constant 0 : i32
    %0 = arith.cmpi eq, %arg2, %c0_i32 : i32
    %1 = arith.extui %0 : i1 to i32
    %c0_i32_0 = arith.constant 0 : i32
    %2 = arith.cmpi ne, %1, %c0_i32_0 : i32
    scf.if %2 {
      %cst_10 = arith.constant 0.000000e+00 : f32
      %12 = vector.broadcast %cst_10 : f32 to vector<8x128xf32>
      %c0_11 = arith.constant 0 : index
      %c0_12 = arith.constant 0 : index
      %13 = vector.load %arg7[%c0_11, %c0_12] : memref<8x128xf32, #tpu.memory_space<vmem>>, vector<8x128xf32>
      tpu.vector_store %arg7[%c0_11, %c0_12], %12 {strides = array<i32>} : memref<8x128xf32, #tpu.memory_space<vmem>>, vector<8x128xf32>,
    } else {
    }
    %c0 = arith.constant 0 : index
    %c0_1 = arith.constant 0 : index
    %3 = vector.load %arg7[%c0, %c0_1] : memref<8x128xf32, #tpu.memory_space<vmem>>, vector<8x128xf32>
    %c0_2 = arith.constant 0 : index
    %c0_3 = arith.constant 0 : index
    %4 = vector.load %arg3[%c0_2, %c0_3] : memref<8x32xf32, #tpu.memory_space<vmem>>, vector<8x32xf32>
    %c0_4 = arith.constant 0 : index
    %c0_5 = arith.constant 0 : index
    %5 = vector.load %arg4[%c0_4, %c0_5] : memref<128x32xf32, #tpu.memory_space<vmem>>, vector<128x32xf32>
    %cst = arith.constant dense<0.000000e+00> : vector<8x128xf32>
    %6 = tpu.matmul %4, %5, %cst {dimension_numbers = #tpu.dot_dimension_numbers<[1], [1], [0], [0], [0, 0, 1, 0], [], []>} : vector<8x32xf32>, vector<128x32xf32>, vector<8x128xf32> -> vector<8x128xf32>
    %7 = arith.addf %3, %6 : vector<8x128xf32>
    %c0_6 = arith.constant 0 : index
    %c0_7 = arith.constant 0 : index
    %8 = vector.load %arg7[%c0_6, %c0_7] : memref<8x128xf32, #tpu.memory_space<vmem>>, vector<8x128xf32>
    tpu.vector_store %arg7[%c0_6, %c0_7], %7 {strides = array<i32>} : memref<8x128xf32, #tpu.memory_space<vmem>>, vector<8x128xf32>,
    %c0_i32_8 = arith.constant 0 : i32
    %9 = arith.cmpi eq, %arg2, %c0_i32_8 : i32
    %10 = arith.extui %9 : i1 to i32
    %c0_i32_9 = arith.constant 0 : i32
    %11 = arith.cmpi ne, %10, %c0_i32_9 : i32
    scf.if %11 {
      %c0_10 = arith.constant 0 : index
      %c0_11 = arith.constant 0 : index
      %12 = vector.load %arg7[%c0_10, %c0_11] : memref<8x128xf32, #tpu.memory_space<vmem>>, vector<8x128xf32>
      %c0_12 = arith.constant 0 : index
      %c0_13 = arith.constant 0 : index
      %13 = vector.load %arg5[%c0_12, %c0_13] : memref<1x128xf32, #tpu.memory_space<vmem>>, vector<1x128xf32>
      %14 = vector.broadcast %13 : vector<1x128xf32> to vector<8x128xf32>
      %15 = arith.subf %12, %14 : vector<8x128xf32>
      %c0_14 = arith.constant 0 : index
      %c0_15 = arith.constant 0 : index
      %16 = vector.load %arg6[%c0_14, %c0_15] : memref<8x128xf32, #tpu.memory_space<vmem>>, vector<8x128xf32>
      tpu.vector_store %arg6[%c0_14, %c0_15], %15 {strides = array<i32>} : memref<8x128xf32, #tpu.memory_space<vmem>>, vector<8x128xf32>,
    } else {
    }
    return
  }
  func.func @transform_0(%arg0: i32, %arg1: i32, %arg2: i32) -> (i32, i32) {
    %c0_i32 = arith.constant 0 : i32
    return %arg0, %arg2 : i32, i32
  }
  func.func @transform_1(%arg0: i32, %arg1: i32, %arg2: i32) -> (i32, i32) {
    %c0_i32 = arith.constant 0 : i32
    return %arg1, %arg2 : i32, i32
  }
  func.func @transform_2(%arg0: i32, %arg1: i32, %arg2: i32) -> (i32, i32) {
    %c0_i32 = arith.constant 0 : i32
    %c0_i32_0 = arith.constant 0 : i32
    return %c0_i32, %arg1 : i32, i32
  }
  func.func @transform_3(%arg0: i32, %arg1: i32, %arg2: i32) -> (i32, i32) {
    %c0_i32 = arith.constant 0 : i32
    return %arg0, %arg1 : i32, i32
  }
}

</mosaic_0001>

<llo_original>
// kernel: tpu_custom_call.1
$region0: #{tpu_custom_call.1}
  #allocation0 [shape = 'u32[]', space=smem, size = 0x4, offset = 0x4, fixed_abs, tag = 'smem constant byte address 0x4 - core index']
  #allocation1 [shape = 'u32[144,128]{1,0:T(1,128)}', space=vmem, size = 0x12000, scoped, tag = 'internal scratch']
  #allocation2 [shape = 'f32[8,128]{1,0:T(8,128)}', space=vmem, size = 0x1000, scoped, tag = 'scratch operand']
  %s0 = inlined_call_operand.vmem [shape: f32[8,32], index: 0, kind: input, shape index: {}]
  %s1 = inlined_call_operand.vmem [shape: f32[128,32], index: 1, kind: input, shape index: {}]
  %s2 = inlined_call_operand.vmem [shape: f32[1,128], index: 2, kind: input, shape index: {}]
  %s3 = inlined_call_operand.hbm [shape: f32[8,128], index: 3, kind: output, shape index: {}]
  %s4 = sld [smem:[#allocation0]]
  $region30: #{tpu_custom_call.1} parent=0
    _
  %s6 = ssub.s32 1, %s4
  %s7 = scalar_select 0, %s6, %s4
  $region1: #{tpu_custom_call.1} parent=0
    #allocation3 [shape = 'u8[4096]{0}', space=vmem, size = 0x1000, scoped, tag = 'output window, operand 0, single buffered']
    #allocation4 [shape = 's32[1]{0}', space=sflag, size = 0x4, scoped, tag = 'scoped memory for tpu_custom_call.1']
    %8 = vsyncpa [#allocation4], 0
    // Predicated region
    $region2: #{tpu_custom_call.1} parent=1 // pred_check
      _
    $region3: #{tpu_custom_call.1} parent=1 // pred_check_branch
      %10 = sbr.rel (0) target = $region5
    $region4: #{tpu_custom_call.1} parent=1 // pred_region
      _
    $region5: #{tpu_custom_call.1} parent=1 // pred_fallthru
      _
    // Predicated region
    $region6: #{tpu_custom_call.1} parent=1 // pred_check
      _
    $region7: #{tpu_custom_call.1} parent=1 // pred_check_branch
      %12 = sbr.rel (0) target = $region9
    $region8: #{tpu_custom_call.1} parent=1 // pred_region
      _
    $region9: #{tpu_custom_call.1} parent=1 // pred_fallthru
      _
    // Predicated region
    $region10: #{tpu_custom_call.1} parent=1 // pred_check
      _
    $region11: #{tpu_custom_call.1} parent=1 // pred_check_branch
      %14 = sbr.rel (0) target = $region13
    $region12: #{tpu_custom_call.1} parent=1 // pred_region
      _
    $region13: #{tpu_custom_call.1} parent=1 // pred_fallthru
      _
    %p15 = scmp.eq.s32.totalorder 0, 0
    // Predicated region
    $region14: #{tpu_custom_call.1} parent=1 // pred_check
      %p16 = pneg %p15
    $region15: #{tpu_custom_call.1} parent=1 // pred_check_branch
      %18 = sbr.rel (%p16) target = $region17
    $region16: #{tpu_custom_call.1} parent=1 // pred_region
      %19 = vst [vmem:[#allocation2] sm:$0xff] 0.0
    $region17: #{tpu_custom_call.1} parent=1 // pred_fallthru
      _
    %v20 = vld [vmem:[#allocation2] sm:$0xff]
    %v21 = vld [vmem:[%s0] sm:$0xff]
    %v22 = vld [vmem:[%s1] sm:$0xff]
    %v23 = vld [vmem:[%s1 + $0x8] sm:$0xff]
    %v24 = vld [vmem:[%s1 + $0x10] sm:$0xff]
    %v25 = vld [vmem:[%s1 + $0x18] sm:$0xff]
    %v26 = vld [vmem:[%s1 + $0x20] sm:$0xff]
    %v27 = vld [vmem:[%s1 + $0x28] sm:$0xff]
    %v28 = vld [vmem:[%s1 + $0x30] sm:$0xff]
    %v29 = vld [vmem:[%s1 + $0x38] sm:$0xff]
    %v30 = vld [vmem:[%s1 + $0x40] sm:$0xff]
    %v31 = vld [vmem:[%s1 + $0x48] sm:$0xff]
    %v32 = vld [vmem:[%s1 + $0x50] sm:$0xff]
    %v33 = vld [vmem:[%s1 + $0x58] sm:$0xff]
    %v34 = vld [vmem:[%s1 + $0x60] sm:$0xff]
    %v35 = vld [vmem:[%s1 + $0x68] sm:$0xff]
    %v36 = vld [vmem:[%s1 + $0x70] sm:$0xff]
    %v37 = vld [vmem:[%s1 + $0x78] sm:$0xff]
    %vm38 = vcmask 261120
    %v40 = vsel %vm38, %v21, 0
    %v43 = vsel %vm38, %v22, 0
    %v46 = vsel %vm38, %v23, 0
    %v49 = vsel %vm38, %v24, 0
    %v52 = vsel %vm38, %v25, 0
    %v55 = vsel %vm38, %v26, 0
    %v58 = vsel %vm38, %v27, 0
    %v61 = vsel %vm38, %v28, 0
    %v64 = vsel %vm38, %v29, 0
    %v67 = vsel %vm38, %v30, 0
    %v70 = vsel %vm38, %v31, 0
    %v73 = vsel %vm38, %v32, 0
    %v76 = vsel %vm38, %v33, 0
    %v79 = vsel %vm38, %v34, 0
    %v82 = vsel %vm38, %v35, 0
    %v85 = vsel %vm38, %v36, 0
    %v88 = vsel %vm38, %v37, 0
    %90 = vmatprep.subr.mxu0 0.0
    %91 = vmatpush1.xpose.msra.mxu0 %v43
    %92 = vmatprep.subr.mxu0 0.0
    %93 = vmatpush1.xpose.msra.mxu0 %v46
    %94 = vmatprep.subr.mxu0 0.0
    %95 = vmatpush1.xpose.msra.mxu0 %v49
    %96 = vmatprep.subr.mxu0 0.0
    %97 = vmatpush1.xpose.msra.mxu0 %v52
    %98 = vmatprep.subr.mxu0 0.0
    %99 = vmatpush1.xpose.msra.mxu0 %v55
    %100 = vmatprep.subr.mxu0 0.0
    %101 = vmatpush1.xpose.msra.mxu0 %v58
    %102 = vmatprep.subr.mxu0 0.0
    %103 = vmatpush1.xpose.msra.mxu0 %v61
    %104 = vmatprep.subr.mxu0 0.0
    %105 = vmatpush1.xpose.msra.mxu0 %v64
    %106 = vmatprep.subr.mxu0 0.0
    %107 = vmatpush1.xpose.msra.mxu0 %v67
    %108 = vmatprep.subr.mxu0 0.0
    %109 = vmatpush1.xpose.msra.mxu0 %v70
    %110 = vmatprep.subr.mxu0 0.0
    %111 = vmatpush1.xpose.msra.mxu0 %v73
    %112 = vmatprep.subr.mxu0 0.0
    %113 = vmatpush1.xpose.msra.mxu0 %v76
    %114 = vmatprep.subr.mxu0 0.0
    %115 = vmatpush1.xpose.msra.mxu0 %v79
    %116 = vmatprep.subr.mxu0 0.0
    %117 = vmatpush1.xpose.msra.mxu0 %v82
    %118 = vmatprep.subr.mxu0 0.0
    %119 = vmatpush1.xpose.msra.mxu0 %v85
    %120 = vmatprep.subr.mxu0 0.0
    %121 = vmatpush1.xpose.msra.mxu0 %v88
    %122 = vmatprep.subr.mxu0 0.0
    %123 = vmatpush1.xpose.msra.mxu0 0.0
    %124 = vmatprep.subr.mxu0 0.0
    %125 = vmatpush1.xpose.msra.mxu0 0.0
    %126 = vmatprep.subr.mxu0 0.0
    %127 = vmatpush1.xpose.msra.mxu0 0.0
    %128 = vmatprep.subr.mxu0 0.0
    %129 = vmatpush1.xpose.msra.mxu0 0.0
    %130 = vmatprep.subr.mxu0 0.0
    %131 = vmatpush1.xpose.msra.mxu0 0.0
    %132 = vmatprep.subr.mxu0 0.0
    %133 = vmatpush1.xpose.msra.mxu0 0.0
    %134 = vmatprep.subr.mxu0 0.0
    %135 = vmatpush1.xpose.msra.mxu0 0.0
    %136 = vmatprep.subr.mxu0 0.0
    %137 = vmatpush1.xpose.msra.mxu0 0.0
    %138 = vmatprep.subr.mxu0 0.0
    %139 = vmatpush1.xpose.msra.mxu0 0.0
    %140 = vmatprep.subr.mxu0 0.0
    %141 = vmatpush1.xpose.msra.mxu0 0.0
    %142 = vmatprep.subr.mxu0 0.0
    %143 = vmatpush1.xpose.msra.mxu0 0.0
    %144 = vmatprep.subr.mxu0 0.0
    %145 = vmatpush1.xpose.msra.mxu0 0.0
    %146 = vmatprep.subr.mxu0 0.0
    %147 = vmatpush1.xpose.msra.mxu0 0.0
    %148 = vmatprep.subr.mxu0 0.0
    %149 = vmatpush1.xpose.msra.mxu0 0.0
    %150 = vmatprep.subr.mxu0 0.0
    %151 = vmatpush1.xpose.msra.mxu0 0.0
    %152 = vmatprep.subr.mxu0 0.0
    %153 = vmatpush1.xpose.msra.mxu0 0.0
    %154 = vmatprep.mubr.f32.mxu0 0.0
    %155 = vmatmul.mubr.f32.gmra.mrb[0].mxu0 %v40
    %v156 = vpop.f32.mrb[0].mxu0
    %v157 = vadd.f32 0.0, %v156
    %v158 = vpop.f32.mrb[0].mxu0
    %159 = vdwg.mxu0
    %v160 = vadd.f32 %v20, %v157
    %161 = vst [vmem:[#allocation2] sm:$0xff] %v160
    // Predicated region
    $region18: #{tpu_custom_call.1} parent=1 // pred_check
      %p162 = pneg %p15
    $region19: #{tpu_custom_call.1} parent=1 // pred_check_branch
      %164 = sbr.rel (%p162) target = $region21
    $region20: #{tpu_custom_call.1} parent=1 // pred_region
      %v165 = vld [vmem:[#allocation2] sm:$0xff]
      %v166 = vld [vmem:[%s2] sm:$0x1]
      %v168 = vlaneseq
      %v169 = vshrl.u32 %v168, 7
      %v170 = vsub.s32 0, %v169
      %v171 = vrot.slane %v166, %v170
      %v173 = vsub.f32 %v165, %v171
      %174 = vst [vmem:[#allocation3] sm:$0xff] %v173
    $region21: #{tpu_custom_call.1} parent=1 // pred_fallthru
      _
    // Predicated region
    $region22: #{tpu_custom_call.1} parent=1 // pred_check
      _
    $region23: #{tpu_custom_call.1} parent=1 // pred_check_branch
      %176 = sbr.rel (0) target = $region25
    $region24: #{tpu_custom_call.1} parent=1 // pred_region
      %s178 = ssub.s32 128, 128
      %179 = vsyncadd [#allocation4], %s178
      %s181 = sshll.u32 [#allocation3], 4
      %s182 = int_to_ptr.vmem [resolvable:$true] %s181
      %184 = dma.vmem_to_hbm [thread:$0]  %s182, 128, %s3, [#allocation4]
    $region25: #{tpu_custom_call.1} parent=1 // pred_fallthru
      _
    // Predicated region
    $region26: #{tpu_custom_call.1} parent=1 // pred_check
      _
    $region27: #{tpu_custom_call.1} parent=1 // pred_check_branch
      %186 = sbr.rel (0) target = $region29
    $region28: #{tpu_custom_call.1} parent=1 // pred_region
      %187 = dma.done [#allocation4], 128
    $region29: #{tpu_custom_call.1} parent=1 // pred_fallthru
      _
    %188 = vsyncpa [#allocation4], 1

</llo_original>
